<compile_context>
chip_gen: v6e
topology: v6e:2x2x1
jax: 0.10.0
libtpu: 0.0.40
codegen_flags: <defaults>
</compile_context>

<pallas_src>
import math

import jax
import jax.numpy as jnp
from jax.experimental import pallas as pl
from jax.experimental.pallas import tpu as pltpu  # noqa: F401  (TPU backend)

_HAS_RECIPROCAL = hasattr(pl, "reciprocal")


def _mlp_softmax_kernel(xT_ref, p_ref, o_ref):
    # xT_ref: (4, B)    input states, batch on the lane axis
    # p_ref : (40, 128) packed parameters (layout: see pack_params)
    # o_ref : (2, B)    softmax-over-batch probabilities, transposed
    xT = xT_ref[...].astype(jnp.float32)              # (4, B)
    p = p_ref[...]                                    # (40, 128) f32

    # ---- fc1 (+bias) as 4 unrolled VPU broadcast-FMAs, then ReLU ----------
    # h[n, b] = b1[n] + sum_k W1[n, k] * x[b, k]
    h = p[0:36, 4:5] + p[0:36, 0:1] * xT[0:1, :]      # (36, B)
    for k in range(1, 4):
        h = h + p[0:36, k:k + 1] * xT[k:k + 1, :]
    h = jnp.maximum(h, 0.0)                           # ReLU

    # ---- fc2 (+bias) + softmax over the batch (lane) axis, per output ----
    # The two output features are independent under Softmax(dim=0), so each
    # row is normalized separately with a lane-wise max/sum reduce.
    for j in range(2):
        # logits_j[b] = b2[j] + sum_n W2[j, n] * h[n, b]        -> (1, B)
        lj = jnp.sum(p[0:36, 5 + j:6 + j] * h, axis=0, keepdims=True)
        lj = lj + p[j:j + 1, 7:8]                     # add b2[j]  (1,1)->(1,B)

        m = jnp.max(lj, axis=1, keepdims=True)        # (1, 1)
        e = jnp.exp(lj - m)                           # (1, B)  (EUP)
        s = jnp.sum(e, axis=1, keepdims=True)         # (1, 1)
        if _HAS_RECIPROCAL:
            r = pl.reciprocal(s, approx=True)         # EUP seed
            r = r * (2.0 - s * r)                     # 1 Newton step -> ~f32
        else:
            r = 1.0 / s
        o_ref[j:j + 1, :] = (e * r).astype(o_ref.dtype)


def pack_params(w1, b1, w2, b2):
    """Pack PyTorch-layout params into one (40, 128) f32 tile (single DMA).

    Layout (rows x lanes):
      P[0:36, 0:4] = fc1.weight      (36, 4)   -> column k = W1[:, k]
      P[0:36, 4]   = fc1.bias        (36,)
      P[0:36, 5:7] = fc2.weight.T    (36, 2)   -> column j = W2[j, :]
      P[0:2,  7]   = fc2.bias        (2,)
    """
    p = jnp.zeros((40, 128), jnp.float32)
    p = p.at[0:36, 0:4].set(w1.astype(jnp.float32))
    p = p.at[0:36, 4].set(b1.astype(jnp.float32))
    p = p.at[0:36, 5:7].set(w2.T.astype(jnp.float32))
    p = p.at[0:2, 7].set(b2.astype(jnp.float32))
    return p


@jax.jit
def nn_forward(x, packed_params):
    """softmax(dim=0)(fc2(relu(fc1(x)))) for x of shape (B, 4). Returns (B, 2)."""
    B = x.shape[0]
    xT = jnp.transpose(x).astype(jnp.float32)         # (4, B): batch on lanes
    out_t = pl.pallas_call(
        _mlp_softmax_kernel,
        out_shape=jax.ShapeDtypeStruct((2, B), jnp.float32),
        # Full-array blocks (tiny problem); exactly two input DMAs: x + params.
        in_specs=[
            pl.BlockSpec((4, B), lambda: (0, 0)),
            pl.BlockSpec((40, 128), lambda: (0, 0)),
        ],
        out_specs=pl.BlockSpec((2, B), lambda: (0, 0)),
    )(xT, packed_params)
    return jnp.transpose(out_t)                       # (B, 2), PyTorch layout


# ----------------------------- init & reference -----------------------------

def _xavier_uniform(key, fan_in, fan_out, dtype=jnp.float32):
    # torch.nn.init.xavier_uniform_ (gain=1): U(-a, a), a = sqrt(6/(fi+fo)).
    # PyTorch weight layout is (out_features, in_features).
    a = math.sqrt(6.0 / (fan_in + fan_out))
    return jax.random.uniform(key, (fan_out, fan_in), dtype, minval=-a, maxval=a)


def init_params(key):
    k1, k2, k3, k4 = jax.random.split(key, 4)
    w1 = _xavier_uniform(k1, fan_in=4, fan_out=36)    # fc1.weight (36, 4)
    w2 = _xavier_uniform(k2, fan_in=36, fan_out=2)    # fc2.weight (2, 36)
    # PyTorch Linear bias default: U(-1/sqrt(fan_in), 1/sqrt(fan_in))
    b1 = jax.random.uniform(k3, (36,), jnp.float32,
                            minval=-1.0 / math.sqrt(4.0),
                            maxval=1.0 / math.sqrt(4.0))
    b2 = jax.random.uniform(k4, (2,), jnp.float32,
                            minval=-1.0 / math.sqrt(36.0),
                            maxval=1.0 / math.sqrt(36.0))
    return w1, b1, w2, b2


def nn_reference(x, w1, b1, w2, b2):
    # Pure-JAX reference matching the PyTorch module exactly.
    h = jnp.maximum(x @ w1.T + b1, 0.0)
    logits = h @ w2.T + b2
    z = logits - jnp.max(logits, axis=0, keepdims=True)
    e = jnp.exp(z)
    return e / jnp.sum(e, axis=0, keepdims=True)


if __name__ == "__main__":
    key = jax.random.PRNGKey(0)
    kx, kp = jax.random.split(key)

    B = 8                                   # small batch of CartPole-like states
    x = jax.random.normal(kx, (B, 4), jnp.float32)
    w1, b1, w2, b2 = init_params(kp)
    packed = pack_params(w1, b1, w2, b2)    # packed once, reused every call

    out = nn_forward(x, packed)
    out = jax.block_until_ready(out)

    ref = nn_reference(x, w1, b1, w2, b2)

    assert out.shape == (B, 2)
    # softmax over dim=0 => each of the 2 columns sums to 1
    col_sums = jnp.sum(out, axis=0)
    assert bool(jnp.all(jnp.abs(col_sums - 1.0) < 1e-4))
    # match the pure-JAX / PyTorch-equivalent reference
    assert bool(jnp.all(jnp.abs(out - ref) < 1e-4))

    print("KERNEL_OK")
</pallas_src>

<mosaic_0001>
module attributes {stable_mosaic.version = 11 : i64} {
  func.func @_mlp_softmax_kernel(%arg0: memref<4x8xf32, #tpu.memory_space<vmem>>, %arg1: memref<40x128xf32, #tpu.memory_space<vmem>>, %arg2: memref<2x8xf32, #tpu.memory_space<vmem>>) attributes {dimension_semantics = [], scalar_prefetch = 0 : i64, scratch_operands = 0 : i64, tpu.core_type = #tpu.core_type<tc>} {
    %c0 = arith.constant 0 : index
    %c0_0 = arith.constant 0 : index
    %0 = vector.load %arg0[%c0, %c0_0] : memref<4x8xf32, #tpu.memory_space<vmem>>, vector<4x8xf32>
    %c0_1 = arith.constant 0 : index
    %c0_2 = arith.constant 0 : index
    %1 = vector.load %arg1[%c0_1, %c0_2] : memref<40x128xf32, #tpu.memory_space<vmem>>, vector<40x128xf32>
    %2 = vector.extract_strided_slice %1 {offsets = [0, 4], sizes = [36, 1], strides = [1, 1]} : vector<40x128xf32> to vector<36x1xf32>
    %3 = vector.extract_strided_slice %1 {offsets = [0, 0], sizes = [36, 1], strides = [1, 1]} : vector<40x128xf32> to vector<36x1xf32>
    %4 = vector.extract_strided_slice %0 {offsets = [0, 0], sizes = [1, 8], strides = [1, 1]} : vector<4x8xf32> to vector<1x8xf32>
    %5 = vector.broadcast %3 : vector<36x1xf32> to vector<36x8xf32>
    %6 = vector.broadcast %4 : vector<1x8xf32> to vector<36x8xf32>
    %7 = arith.mulf %5, %6 : vector<36x8xf32>
    %8 = vector.broadcast %2 : vector<36x1xf32> to vector<36x8xf32>
    %9 = arith.addf %8, %7 : vector<36x8xf32>
    %10 = vector.extract_strided_slice %1 {offsets = [0, 1], sizes = [36, 1], strides = [1, 1]} : vector<40x128xf32> to vector<36x1xf32>
    %11 = vector.extract_strided_slice %0 {offsets = [1, 0], sizes = [1, 8], strides = [1, 1]} : vector<4x8xf32> to vector<1x8xf32>
    %12 = vector.broadcast %10 : vector<36x1xf32> to vector<36x8xf32>
    %13 = vector.broadcast %11 : vector<1x8xf32> to vector<36x8xf32>
    %14 = arith.mulf %12, %13 : vector<36x8xf32>
    %15 = arith.addf %9, %14 : vector<36x8xf32>
    %16 = vector.extract_strided_slice %1 {offsets = [0, 2], sizes = [36, 1], strides = [1, 1]} : vector<40x128xf32> to vector<36x1xf32>
    %17 = vector.extract_strided_slice %0 {offsets = [2, 0], sizes = [1, 8], strides = [1, 1]} : vector<4x8xf32> to vector<1x8xf32>
    %18 = vector.broadcast %16 : vector<36x1xf32> to vector<36x8xf32>
    %19 = vector.broadcast %17 : vector<1x8xf32> to vector<36x8xf32>
    %20 = arith.mulf %18, %19 : vector<36x8xf32>
    %21 = arith.addf %15, %20 : vector<36x8xf32>
    %22 = vector.extract_strided_slice %1 {offsets = [0, 3], sizes = [36, 1], strides = [1, 1]} : vector<40x128xf32> to vector<36x1xf32>
    %23 = vector.extract_strided_slice %0 {offsets = [3, 0], sizes = [1, 8], strides = [1, 1]} : vector<4x8xf32> to vector<1x8xf32>
    %24 = vector.broadcast %22 : vector<36x1xf32> to vector<36x8xf32>
    %25 = vector.broadcast %23 : vector<1x8xf32> to vector<36x8xf32>
    %26 = arith.mulf %24, %25 : vector<36x8xf32>
    %27 = arith.addf %21, %26 : vector<36x8xf32>
    %cst = arith.constant 0.000000e+00 : f32
    %28 = vector.broadcast %cst : f32 to vector<36x8xf32>
    %29 = arith.maximumf %27, %28 : vector<36x8xf32>
    %30 = vector.extract_strided_slice %1 {offsets = [0, 5], sizes = [36, 1], strides = [1, 1]} : vector<40x128xf32> to vector<36x1xf32>
    %31 = vector.broadcast %30 : vector<36x1xf32> to vector<36x8xf32>
    %32 = arith.mulf %31, %29 : vector<36x8xf32>
    %cst_3 = arith.constant dense<0.000000e+00> : vector<8xf32>
    %33 = vector.multi_reduction <add>, %32, %cst_3 [0] : vector<36x8xf32> to vector<8xf32>
    %34 = vector.shape_cast %33 : vector<8xf32> to vector<1x8xf32>
    %35 = vector.extract_strided_slice %1 {offsets = [0, 7], sizes = [1, 1], strides = [1, 1]} : vector<40x128xf32> to vector<1x1xf32>
    %36 = vector.broadcast %35 : vector<1x1xf32> to vector<1x8xf32>
    %37 = arith.addf %34, %36 : vector<1x8xf32>
    %cst_4 = arith.constant dense<0xFF800000> : vector<1xf32>
    %38 = vector.multi_reduction <maximumf>, %37, %cst_4 [1] : vector<1x8xf32> to vector<1xf32>
    %39 = vector.shape_cast %38 : vector<1xf32> to vector<1x1xf32>
    %40 = vector.broadcast %39 : vector<1x1xf32> to vector<1x8xf32>
    %41 = arith.subf %37, %40 : vector<1x8xf32>
    %42 = math.exp %41 : vector<1x8xf32>
    %cst_5 = arith.constant dense<0.000000e+00> : vector<1xf32>
    %43 = vector.multi_reduction <add>, %42, %cst_5 [1] : vector<1x8xf32> to vector<1xf32>
    %44 = vector.shape_cast %43 : vector<1xf32> to vector<1x1xf32>
    %45 = tpu.reciprocal %44 {approx = true} : vector<1x1xf32> -> vector<1x1xf32>
    %46 = arith.mulf %44, %45 : vector<1x1xf32>
    %cst_6 = arith.constant 2.000000e+00 : f32
    %47 = vector.broadcast %cst_6 : f32 to vector<1x1xf32>
    %48 = arith.subf %47, %46 : vector<1x1xf32>
    %49 = arith.mulf %45, %48 : vector<1x1xf32>
    %50 = vector.broadcast %49 : vector<1x1xf32> to vector<1x8xf32>
    %51 = arith.mulf %42, %50 : vector<1x8xf32>
    %c0_7 = arith.constant 0 : index
    %c0_8 = arith.constant 0 : index
    %52 = vector.load %arg2[%c0_7, %c0_8] : memref<2x8xf32, #tpu.memory_space<vmem>>, vector<1x8xf32>
    tpu.vector_store %arg2[%c0_7, %c0_8], %51 {strides = array<i32>} : memref<2x8xf32, #tpu.memory_space<vmem>>, vector<1x8xf32>,
    %53 = vector.extract_strided_slice %1 {offsets = [0, 6], sizes = [36, 1], strides = [1, 1]} : vector<40x128xf32> to vector<36x1xf32>
    %54 = vector.broadcast %53 : vector<36x1xf32> to vector<36x8xf32>
    %55 = arith.mulf %54, %29 : vector<36x8xf32>
    %cst_9 = arith.constant dense<0.000000e+00> : vector<8xf32>
    %56 = vector.multi_reduction <add>, %55, %cst_9 [0] : vector<36x8xf32> to vector<8xf32>
    %57 = vector.shape_cast %56 : vector<8xf32> to vector<1x8xf32>
    %58 = vector.extract_strided_slice %1 {offsets = [1, 7], sizes = [1, 1], strides = [1, 1]} : vector<40x128xf32> to vector<1x1xf32>
    %59 = vector.broadcast %58 : vector<1x1xf32> to vector<1x8xf32>
    %60 = arith.addf %57, %59 : vector<1x8xf32>
    %cst_10 = arith.constant dense<0xFF800000> : vector<1xf32>
    %61 = vector.multi_reduction <maximumf>, %60, %cst_10 [1] : vector<1x8xf32> to vector<1xf32>
    %62 = vector.shape_cast %61 : vector<1xf32> to vector<1x1xf32>
    %63 = vector.broadcast %62 : vector<1x1xf32> to vector<1x8xf32>
    %64 = arith.subf %60, %63 : vector<1x8xf32>
    %65 = math.exp %64 : vector<1x8xf32>
    %cst_11 = arith.constant dense<0.000000e+00> : vector<1xf32>
    %66 = vector.multi_reduction <add>, %65, %cst_11 [1] : vector<1x8xf32> to vector<1xf32>
    %67 = vector.shape_cast %66 : vector<1xf32> to vector<1x1xf32>
    %68 = tpu.reciprocal %67 {approx = true} : vector<1x1xf32> -> vector<1x1xf32>
    %69 = arith.mulf %67, %68 : vector<1x1xf32>
    %cst_12 = arith.constant 2.000000e+00 : f32
    %70 = vector.broadcast %cst_12 : f32 to vector<1x1xf32>
    %71 = arith.subf %70, %69 : vector<1x1xf32>
    %72 = arith.mulf %68, %71 : vector<1x1xf32>
    %73 = vector.broadcast %72 : vector<1x1xf32> to vector<1x8xf32>
    %74 = arith.mulf %65, %73 : vector<1x8xf32>
    %c1 = arith.constant 1 : index
    %c0_13 = arith.constant 0 : index
    %75 = vector.load %arg2[%c1, %c0_13] : memref<2x8xf32, #tpu.memory_space<vmem>>, vector<1x8xf32>
    tpu.vector_store %arg2[%c1, %c0_13], %74 {strides = array<i32>} : memref<2x8xf32, #tpu.memory_space<vmem>>, vector<1x8xf32>,
    return
  }
}

</mosaic_0001>

<llo_original>
// kernel: nn_forward.1
$region0: #{nn_forward.1}
  #allocation0 [shape = 'u32[]', space=smem, size = 0x4, offset = 0x4, fixed_abs, tag = 'smem constant byte address 0x4 - core index']
  #allocation1 [shape = 'u32[144,128]{1,0:T(1,128)}', space=vmem, size = 0x12000, scoped, tag = 'internal scratch']
  %s0 = inlined_call_operand.hbm [shape: f32[4,8], index: 0, kind: input, shape index: {}]
  %s1 = inlined_call_operand.hbm [shape: f32[40,128], index: 1, kind: input, shape index: {}]
  %s2 = inlined_call_operand.hbm [shape: f32[2,8], index: 2, kind: output, shape index: {}]
  %s3 = sld [smem:[#allocation0]]
  $region26: #{nn_forward.1} parent=0
    _
  %s5 = ssub.s32 1, %s3
  %s6 = scalar_select 0, %s5, %s3
  $region1: #{nn_forward.1} parent=0
    #allocation2 [shape = 'u8[2048]{0}', space=vmem, size = 0x800, scoped, tag = 'input window, operand 0, single buffered']
    #allocation3 [shape = 's32[1]{0}', space=sflag, size = 0x4, scoped, tag = 'scoped memory for nn_forward.1']
    #allocation4 [shape = 's32[1]{0}', space=sflag, size = 0x4, scoped, tag = 'scoped memory for nn_forward.1']
    #allocation5 [shape = 'u8[20480]{0}', space=vmem, size = 0x5000, scoped, tag = 'input window, operand 1, single buffered']
    #allocation6 [shape = 's32[1]{0}', space=sflag, size = 0x4, scoped, tag = 'scoped memory for nn_forward.1']
    #allocation7 [shape = 'u8[1024]{0}', space=vmem, size = 0x400, scoped, tag = 'output window, operand 0, single buffered']
    %7 = vsyncpa [#allocation3], 0
    %8 = vsyncpa [#allocation6], 0
    %9 = vsyncpa [#allocation4], 0
    // Predicated region
    $region2: #{nn_forward.1} parent=1 // pred_check
      _
    $region3: #{nn_forward.1} parent=1 // pred_check_branch
      %11 = sbr.rel (0) target = $region5
    $region4: #{nn_forward.1} parent=1 // pred_region
      %s13 = ssub.s32 64, 64
      %14 = vsyncadd [#allocation3], %s13
      %s16 = sshll.u32 [#allocation2], 4
      %s17 = int_to_ptr.vmem [resolvable:$true] %s16
      %19 = dma.hbm_to_vmem [thread:$0]  %s0, 64, %s17, [#allocation3]
    $region5: #{nn_forward.1} parent=1 // pred_fallthru
      _
    // Predicated region
    $region6: #{nn_forward.1} parent=1 // pred_check
      _
    $region7: #{nn_forward.1} parent=1 // pred_check_branch
      %21 = sbr.rel (0) target = $region9
    $region8: #{nn_forward.1} parent=1 // pred_region
      %s23 = ssub.s32 640, 640
      %24 = vsyncadd [#allocation6], %s23
      %s25 = sshll.u32 [#allocation5], 4
      %s26 = int_to_ptr.vmem [resolvable:$true] %s25
      %31 = dma.hbm_to_vmem [thread:$0]  %s1, 640, %s26, [#allocation6], 128, 128, 8
    $region9: #{nn_forward.1} parent=1 // pred_fallthru
      _
    // Predicated region
    $region10: #{nn_forward.1} parent=1 // pred_check
      _
    $region11: #{nn_forward.1} parent=1 // pred_check_branch
      %33 = sbr.rel (0) target = $region13
    $region12: #{nn_forward.1} parent=1 // pred_region
      %34 = dma.done [#allocation3], 64
    $region13: #{nn_forward.1} parent=1 // pred_fallthru
      _
    // Predicated region
    $region14: #{nn_forward.1} parent=1 // pred_check
      _
    $region15: #{nn_forward.1} parent=1 // pred_check_branch
      %36 = sbr.rel (0) target = $region17
    $region16: #{nn_forward.1} parent=1 // pred_region
      %37 = dma.done [#allocation6], 640
    $region17: #{nn_forward.1} parent=1 // pred_fallthru
      _
    %v38 = vld [vmem:[#allocation2] sm:$0xf]
    %v39 = vld [vmem:[#allocation5] sm:$0xff]
    %v40 = vld [vmem:[#allocation5 + $0x8] sm:$0xff]
    %v41 = vld [vmem:[#allocation5 + $0x10] sm:$0xff]
    %v42 = vld [vmem:[#allocation5 + $0x18] sm:$0xff]
    %v43 = vld [vmem:[#allocation5 + $0x20] sm:$0xff]
    %45 = vset.pattern.permute.xlu0 0
    %46 = vperm.xlu0 %45, %v39
    %v47 = vpop.permute.xlu0 %46
    %50 = vset.pattern.permute.xlu0 0
    %51 = vperm.xlu0 %50, %v40
    %v52 = vpop.permute.xlu0 %51
    %55 = vset.pattern.permute.xlu0 0
    %56 = vperm.xlu0 %55, %v41
    %v57 = vpop.permute.xlu0 %56
    %60 = vset.pattern.permute.xlu0 0
    %61 = vperm.xlu0 %60, %v42
    %v62 = vpop.permute.xlu0 %61
    %65 = vset.pattern.permute.xlu0 0
    %66 = vperm.xlu0 %65, %v43
    %v67 = vpop.permute.xlu0 %66
    %v69 = vlaneseq
    %v70 = vshrl.u32 %v69, 7
    %v71 = vsub.s32 0, %v70
    %v72 = vrot.slane %v38, %v71
    %v73 = vmul.f32 %v47, %v72
    %v74 = vmul.f32 %v52, %v72
    %v75 = vmul.f32 %v57, %v72
    %v76 = vmul.f32 %v62, %v72
    %v77 = vmul.f32 %v67, %v72
    %78 = vset.pattern.permute.xlu0 4
    %79 = vperm.xlu0 %78, %v39
    %v80 = vpop.permute.xlu0 %79
    %82 = vset.pattern.permute.xlu0 4
    %83 = vperm.xlu0 %82, %v40
    %v84 = vpop.permute.xlu0 %83
    %86 = vset.pattern.permute.xlu0 4
    %87 = vperm.xlu0 %86, %v41
    %v88 = vpop.permute.xlu0 %87
    %90 = vset.pattern.permute.xlu0 4
    %91 = vperm.xlu0 %90, %v42
    %v92 = vpop.permute.xlu0 %91
    %94 = vset.pattern.permute.xlu0 4
    %95 = vperm.xlu0 %94, %v43
    %v96 = vpop.permute.xlu0 %95
    %v98 = vadd.f32 %v80, %v73
    %v99 = vadd.f32 %v84, %v74
    %v100 = vadd.f32 %v88, %v75
    %v101 = vadd.f32 %v92, %v76
    %v102 = vadd.f32 %v96, %v77
    %103 = vset.pattern.permute.xlu0 1
    %104 = vperm.xlu0 %103, %v39
    %v105 = vpop.permute.xlu0 %104
    %107 = vset.pattern.permute.xlu0 1
    %108 = vperm.xlu0 %107, %v40
    %v109 = vpop.permute.xlu0 %108
    %111 = vset.pattern.permute.xlu0 1
    %112 = vperm.xlu0 %111, %v41
    %v113 = vpop.permute.xlu0 %112
    %115 = vset.pattern.permute.xlu0 1
    %116 = vperm.xlu0 %115, %v42
    %v117 = vpop.permute.xlu0 %116
    %119 = vset.pattern.permute.xlu0 1
    %120 = vperm.xlu0 %119, %v43
    %v121 = vpop.permute.xlu0 %120
    %v123 = vlaneseq
    %v124 = vshrl.u32 %v123, 7
    %v125 = vsub.s32 1, %v124
    %v126 = vrot.slane %v38, %v125
    %v127 = vmul.f32 %v105, %v126
    %v128 = vmul.f32 %v109, %v126
    %v129 = vmul.f32 %v113, %v126
    %v130 = vmul.f32 %v117, %v126
    %v131 = vmul.f32 %v121, %v126
    %v132 = vadd.f32 %v98, %v127
    %v133 = vadd.f32 %v99, %v128
    %v134 = vadd.f32 %v100, %v129
    %v135 = vadd.f32 %v101, %v130
    %v136 = vadd.f32 %v102, %v131
    %137 = vset.pattern.permute.xlu0 2
    %138 = vperm.xlu0 %137, %v39
    %v139 = vpop.permute.xlu0 %138
    %141 = vset.pattern.permute.xlu0 2
    %142 = vperm.xlu0 %141, %v40
    %v143 = vpop.permute.xlu0 %142
    %145 = vset.pattern.permute.xlu0 2
    %146 = vperm.xlu0 %145, %v41
    %v147 = vpop.permute.xlu0 %146
    %149 = vset.pattern.permute.xlu0 2
    %150 = vperm.xlu0 %149, %v42
    %v151 = vpop.permute.xlu0 %150
    %153 = vset.pattern.permute.xlu0 2
    %154 = vperm.xlu0 %153, %v43
    %v155 = vpop.permute.xlu0 %154
    %v157 = vlaneseq
    %v158 = vshrl.u32 %v157, 7
    %v159 = vsub.s32 2, %v158
    %v160 = vrot.slane %v38, %v159
    %v161 = vmul.f32 %v139, %v160
    %v162 = vmul.f32 %v143, %v160
    %v163 = vmul.f32 %v147, %v160
    %v164 = vmul.f32 %v151, %v160
    %v165 = vmul.f32 %v155, %v160
    %v166 = vadd.f32 %v132, %v161
    %v167 = vadd.f32 %v133, %v162
    %v168 = vadd.f32 %v134, %v163
    %v169 = vadd.f32 %v135, %v164
    %v170 = vadd.f32 %v136, %v165
    %171 = vset.pattern.permute.xlu0 3
    %172 = vperm.xlu0 %171, %v39
    %v173 = vpop.permute.xlu0 %172
    %175 = vset.pattern.permute.xlu0 3
    %176 = vperm.xlu0 %175, %v40
    %v177 = vpop.permute.xlu0 %176
    %179 = vset.pattern.permute.xlu0 3
    %180 = vperm.xlu0 %179, %v41
    %v181 = vpop.permute.xlu0 %180
    %183 = vset.pattern.permute.xlu0 3
    %184 = vperm.xlu0 %183, %v42
    %v185 = vpop.permute.xlu0 %184
    %187 = vset.pattern.permute.xlu0 3
    %188 = vperm.xlu0 %187, %v43
    %v189 = vpop.permute.xlu0 %188
    %v191 = vlaneseq
    %v192 = vshrl.u32 %v191, 7
    %v193 = vsub.s32 3, %v192
    %v194 = vrot.slane %v38, %v193
    %v195 = vmul.f32 %v173, %v194
    %v196 = vmul.f32 %v177, %v194
    %v197 = vmul.f32 %v181, %v194
    %v198 = vmul.f32 %v185, %v194
    %v199 = vmul.f32 %v189, %v194
    %v200 = vadd.f32 %v166, %v195
    %v201 = vadd.f32 %v167, %v196
    %v202 = vadd.f32 %v168, %v197
    %v203 = vadd.f32 %v169, %v198
    %v204 = vadd.f32 %v170, %v199
    %v205 = vmax.f32 %v200, 0.0
    %v206 = vmax.f32 %v201, 0.0
    %v207 = vmax.f32 %v202, 0.0
    %v208 = vmax.f32 %v203, 0.0
    %v209 = vmax.f32 %v204, 0.0
    %210 = vset.pattern.permute.xlu0 5
    %211 = vperm.xlu0 %210, %v39
    %v212 = vpop.permute.xlu0 %211
    %214 = vset.pattern.permute.xlu0 5
    %215 = vperm.xlu0 %214, %v40
    %v216 = vpop.permute.xlu0 %215
    %218 = vset.pattern.permute.xlu0 5
    %219 = vperm.xlu0 %218, %v41
    %v220 = vpop.permute.xlu0 %219
    %222 = vset.pattern.permute.xlu0 5
    %223 = vperm.xlu0 %222, %v42
    %v224 = vpop.permute.xlu0 %223
    %226 = vset.pattern.permute.xlu0 5
    %227 = vperm.xlu0 %226, %v43
    %v228 = vpop.permute.xlu0 %227
    %v230 = vmul.f32 %v212, %v205
    %v231 = vmul.f32 %v216, %v206
    %v232 = vmul.f32 %v220, %v207
    %v233 = vmul.f32 %v224, %v208
    %v234 = vmul.f32 %v228, %v209
    %vm235 = vcmask 64512
    %v236 = vsel %vm235, %v230, 0.0
    %v237 = vsel %vm235, %v231, 0.0
    %v238 = vadd.f32 %v236, %v237
    %v239 = vsel %vm235, %v232, 0.0
    %v240 = vadd.f32 %v238, %v239
    %v241 = vsel %vm235, %v233, 0.0
    %v242 = vadd.f32 %v240, %v241
    %vm243 = vcmask 60416
    %v244 = vsel %vm243, %v234, 0.0
    %v245 = vadd.f32 %v242, %v244
    %v246 = vrot.slane %v245, 4
    %v247 = vadd.f32 %v245, %v246
    %v248 = vrot.slane %v247, 2
    %v249 = vadd.f32 %v247, %v248
    %v250 = vrot.slane %v249, 1
    %v251 = vadd.f32 %v249, %v250
    %252 = vset.pattern.permute.xlu0 7
    %253 = vperm.xlu0 %252, %v39
    %v254 = vpop.permute.xlu0 %253
    %v256 = vadd.f32 %v251, %v254
    %vm257 = vcmask 57344
    %v258 = vsel %vm257, %v256, -inf
    %259 = vmax.xlane.f32.xlu0 %v258
    %v260 = vpop.xlane.xlu0 %259
    %v261 = vsub.f32 %v256, %v260
    %v262 = vmul.f32 %v261, 1.442695
    %v263 = vpow.pop %v262
    %v264 = vsel %vm257, %v263, 0.0
    %265 = vadd.xlane.f32.xlu0 %v264
    %v266 = vpop.xlane.xlu0 %265
    %v267 = vrcp.pop %v266
    %v268 = vmul.f32 %v266, %v267
    %v269 = vsub.f32 2.0, %v268
    %v270 = vmul.f32 %v267, %v269
    %v271 = vmul.f32 %v263, %v270
    %272 = vst.msk [vmem:[#allocation7] sm:$0x1] %vm257, %v271
    %273 = vset.pattern.permute.xlu0 6
    %274 = vperm.xlu0 %273, %v39
    %v275 = vpop.permute.xlu0 %274
    %277 = vset.pattern.permute.xlu0 6
    %278 = vperm.xlu0 %277, %v40
    %v279 = vpop.permute.xlu0 %278
    %281 = vset.pattern.permute.xlu0 6
    %282 = vperm.xlu0 %281, %v41
    %v283 = vpop.permute.xlu0 %282
    %285 = vset.pattern.permute.xlu0 6
    %286 = vperm.xlu0 %285, %v42
    %v287 = vpop.permute.xlu0 %286
    %289 = vset.pattern.permute.xlu0 6
    %290 = vperm.xlu0 %289, %v43
    %v291 = vpop.permute.xlu0 %290
    %v293 = vmul.f32 %v275, %v205
    %v294 = vmul.f32 %v279, %v206
    %v295 = vmul.f32 %v283, %v207
    %v296 = vmul.f32 %v287, %v208
    %v297 = vmul.f32 %v291, %v209
    %v298 = vsel %vm235, %v293, 0.0
    %v299 = vsel %vm235, %v294, 0.0
    %v300 = vadd.f32 %v298, %v299
    %v301 = vsel %vm235, %v295, 0.0
    %v302 = vadd.f32 %v300, %v301
    %v303 = vsel %vm235, %v296, 0.0
    %v304 = vadd.f32 %v302, %v303
    %v305 = vsel %vm243, %v297, 0.0
    %v306 = vadd.f32 %v304, %v305
    %v307 = vrot.slane %v306, 4
    %v308 = vadd.f32 %v306, %v307
    %v309 = vrot.slane %v308, 2
    %v310 = vadd.f32 %v308, %v309
    %v311 = vrot.slane %v310, 1
    %v312 = vadd.f32 %v310, %v311
    %v313 = vadd.f32 %v312, %v254
    %vm314 = vcmask 58369
    %v315 = vsel %vm314, %v313, -inf
    %316 = vmax.xlane.f32.xlu0 %v315
    %v317 = vpop.xlane.xlu0 %316
    %v318 = vsub.f32 %v313, %v317
    %v319 = vmul.f32 %v318, 1.442695
    %v320 = vpow.pop %v319
    %v321 = vsel %vm314, %v320, 0.0
    %322 = vadd.xlane.f32.xlu0 %v321
    %v323 = vpop.xlane.xlu0 %322
    %v324 = vrcp.pop %v323
    %v325 = vmul.f32 %v323, %v324
    %v326 = vsub.f32 2.0, %v325
    %v327 = vmul.f32 %v324, %v326
    %v328 = vmul.f32 %v320, %v327
    %329 = vst.msk [vmem:[#allocation7] sm:$0x2] %vm314, %v328
    // Predicated region
    $region18: #{nn_forward.1} parent=1 // pred_check
      _
    $region19: #{nn_forward.1} parent=1 // pred_check_branch
      %331 = sbr.rel (0) target = $region21
    $region20: #{nn_forward.1} parent=1 // pred_region
      %s333 = ssub.s32 32, 32
      %334 = vsyncadd [#allocation4], %s333
      %s336 = sshll.u32 [#allocation7], 4
      %s337 = int_to_ptr.vmem [resolvable:$true] %s336
      %339 = dma.vmem_to_hbm [thread:$0]  %s337, 32, %s2, [#allocation4]
    $region21: #{nn_forward.1} parent=1 // pred_fallthru
      _
    // Predicated region
    $region22: #{nn_forward.1} parent=1 // pred_check
      _
    $region23: #{nn_forward.1} parent=1 // pred_check_branch
      %341 = sbr.rel (0) target = $region25
    $region24: #{nn_forward.1} parent=1 // pred_region
      %342 = dma.done [#allocation4], 32
    $region25: #{nn_forward.1} parent=1 // pred_fallthru
      _
    %343 = vsyncpa [#allocation3], 1
    %344 = vsyncpa [#allocation6], 1
    %345 = vsyncpa [#allocation4], 1

</llo_original>
